<compile_context>
chip_gen: v5e
topology: v5e:2x2
jax: 0.10.0
libtpu: 0.0.40
codegen_flags: <defaults>
</compile_context>

<pallas_src>
import jax
import jax.numpy as jnp
from jax.experimental import pallas as pl
from jax.experimental.pallas import tpu as pltpu


def _round_up(x: int, m: int) -> int:
    return ((x + m - 1) // m) * m


def _lm_head_kernel(x_ref, w_ref, b_ref, out_ref):
    """One (row-tile i, vocab-tile j) grid step.

    x_ref  : (TM, H)  param_dtype  gathered embeddings (row tile)
    w_ref  : (H, TN)  param_dtype  pre-transposed output_layer.weight tile
    b_ref  : (1, TN)  f32          output_layer.bias tile
    out_ref: (TM, TN) out_dtype    logits tile
    """
    acc = jnp.dot(x_ref[...], w_ref[...], preferred_element_type=jnp.float32)
    out_ref[...] = (acc + b_ref[...].astype(jnp.float32)).astype(out_ref.dtype)


def base_lm_forward(input_ids, emb_table, out_weight, out_bias, *,
                    param_dtype=jnp.float32, out_dtype=jnp.float32):
    """input_ids: (B, S) int -> logits (B, S, V).

    emb_table : (V, E)  nn.Embedding.weight  (row pad_idx pre-zeroed)
    out_weight: (V, H)  nn.Linear.weight     (native PyTorch layout)
    out_bias  : (V,)    nn.Linear.bias
    """
    B, S = input_ids.shape
    V, E = emb_table.shape
    Vw, H = out_weight.shape
    assert V == Vw and E == H, "base model feeds embeddings into output_layer"

    BS = B * S
    # PyTorch nn.Embedding raises on OOB ids; clamp here instead (documented
    # semantic difference: OOB ids map to the last row rather than raising).
    ids = jnp.clip(input_ids.reshape(BS).astype(jnp.int32), 0, V - 1)

    # --- Embedding lookup + dropout (eval-mode identity), decoupled from the
    #     matmul pipeline per review: BS*E bytes of extra HBM round trip is
    #     negligible vs the V*H weight stream.
    x = jnp.take(emb_table, ids, axis=0).astype(param_dtype)
    # TODO(synk): training-mode dropout (pltpu.prng_seed + stateful_bernoulli
    # mask with 1/(1-p) scaling) omitted for eval parity.

    # --- Tile sizes ---------------------------------------------------------
    # Row tile: 256 when possible (weight-stream arithmetic intensity scales
    # linearly with TM); multiple of 8 (f32 sublane) otherwise.
    TM = 256 if BS >= 256 else _round_up(BS, 8)
    BS_pad = _round_up(BS, TM)
    # Vocab tile: always >= 256 (full MXU width on v6e/v7x); pad V up to it.
    TN = 512 if V >= 2048 else 256
    V_pad = _round_up(V, TN)

    x_pad = jnp.pad(x, ((0, BS_pad - BS), (0, 0)))
    # Pre-transpose ONCE to (H, V) so the kernel feeds the MXU its natural
    # [K, N] layout (no per-step RHS re-layout), then pad the vocab axis.
    w_t = jnp.pad(out_weight.T.astype(param_dtype), ((0, 0), (0, V_pad - V)))
    b2d = jnp.pad(out_bias.astype(jnp.float32), (0, V_pad - V)).reshape(1, V_pad)

    grid = (BS_pad // TM, V_pad // TN)
    num_row_tiles = grid[0]

    p_item = jnp.dtype(param_dtype).itemsize
    o_item = jnp.dtype(out_dtype).itemsize

    # Accurate advisory traffic: weight (and bias) are re-streamed once per
    # row tile; activations are read once; logits written once.
    cost = pl.CostEstimate(
        flops=int(2 * BS_pad * H * V_pad),
        transcendentals=0,
        bytes_accessed=int(BS_pad * H * p_item
                           + num_row_tiles * H * V_pad * p_item
                           + num_row_tiles * V_pad * 4
                           + BS_pad * V_pad * o_item),
    )

    # Explicit VMEM budget: double-buffered x/w/bias/out tiles + headroom,
    # capped safely below v7x's 64 MiB physical VMEM (also covers v5e's
    # 16 MiB default scoped limit being too small for large H).
    tile_bytes = (TM * H * p_item + H * TN * p_item + TN * 4 + TM * TN * o_item)
    vmem_limit = int(min(max(4 * tile_bytes, 4 << 20), 56 << 20))

    logits_flat = pl.pallas_call(
        _lm_head_kernel,
        out_shape=jax.ShapeDtypeStruct((BS_pad, V_pad), out_dtype),
        grid_spec=pltpu.PrefetchScalarGridSpec(
            num_scalar_prefetch=0,
            grid=grid,
            in_specs=[
                pl.BlockSpec((TM, H), lambda i, j: (i, 0)),   # activations
                pl.BlockSpec((H, TN), lambda i, j: (0, j)),   # weight (K, N)
                pl.BlockSpec((1, TN), lambda i, j: (0, j)),   # bias
            ],
            out_specs=pl.BlockSpec((TM, TN), lambda i, j: (i, j)),
        ),
        compiler_params=pltpu.CompilerParams(
            # No cross-step scratch reuse remains, so both axes are parallel:
            # v7x can split the vocab axis across its 2 TensorCores even when
            # there is only one row tile (decode-shaped inputs).
            dimension_semantics=("parallel", "parallel"),
            vmem_limit_bytes=vmem_limit,
        ),
        cost_estimate=cost,
    )(x_pad, w_t, b2d)

    return logits_flat[:BS, :V].reshape(B, S, V)


if __name__ == "__main__":
    # Small-but-tileable shapes consistent with the module's __init__.
    vocab_size = 512
    embedding_dim = 128
    hidden_dim = 128          # == embedding_dim for the base composition
    pad_idx = 0
    batch, seq = 2, 8

    key = jax.random.PRNGKey(0)
    k_emb, k_w, k_b, k_ids = jax.random.split(key, 4)

    # nn.Embedding default init: N(0,1); padding_idx row zeroed.
    emb_table = jax.random.normal(k_emb, (vocab_size, embedding_dim), jnp.float32)
    emb_table = emb_table.at[pad_idx].set(0.0)

    # nn.Linear default init: U(-1/sqrt(fan_in), 1/sqrt(fan_in)).
    bound = 1.0 / (hidden_dim ** 0.5)
    out_weight = jax.random.uniform(k_w, (vocab_size, hidden_dim), jnp.float32,
                                    -bound, bound)
    out_bias = jax.random.uniform(k_b, (vocab_size,), jnp.float32, -bound, bound)

    input_ids = jax.random.randint(k_ids, (batch, seq), 0, vocab_size, jnp.int32)

    # Demo uses f32 params so the check stays tight; pass param_dtype=bf16
    # (and optionally out_dtype=bf16) for production on v6e / v7x.
    logits = base_lm_forward(input_ids, emb_table, out_weight, out_bias,
                             param_dtype=jnp.float32, out_dtype=jnp.float32)
    jax.block_until_ready(logits)

    # Plain-JAX reference for sanity.
    ref = jnp.take(emb_table, input_ids, axis=0) @ out_weight.T + out_bias
    assert logits.shape == (batch, seq, vocab_size)
    assert jnp.allclose(logits, ref, atol=1e-4, rtol=1e-4), "mismatch vs reference"

    print("KERNEL_OK")
</pallas_src>

<mosaic_0001>
module attributes {stable_mosaic.version = 11 : i64} {
  func.func @_lm_head_kernel(%arg0: i32, %arg1: i32, %arg2: memref<16x128xf32, #tpu.memory_space<vmem>>, %arg3: memref<128x256xf32, #tpu.memory_space<vmem>>, %arg4: memref<1x256xf32, #tpu.memory_space<vmem>>, %arg5: memref<16x256xf32, #tpu.memory_space<vmem>>) attributes {dimension_semantics = [#tpu.dimension_semantics<parallel>, #tpu.dimension_semantics<parallel>], iteration_bounds = array<i64: 1, 2>, scalar_prefetch = 0 : i64, scratch_operands = 0 : i64, tpu.core_type = #tpu.core_type<tc>, window_params = [{transform_indices = @transform_0, window_bounds = array<i64: 16, 128>}, {transform_indices = @transform_1, window_bounds = array<i64: 128, 256>}, {transform_indices = @transform_2, window_bounds = array<i64: 1, 256>}, {transform_indices = @transform_3, window_bounds = array<i64: 16, 256>}]} {
    %c0 = arith.constant 0 : index
    %c0_0 = arith.constant 0 : index
    %0 = vector.load %arg2[%c0, %c0_0] : memref<16x128xf32, #tpu.memory_space<vmem>>, vector<16x128xf32>
    %c0_1 = arith.constant 0 : index
    %c0_2 = arith.constant 0 : index
    %1 = vector.load %arg3[%c0_1, %c0_2] : memref<128x256xf32, #tpu.memory_space<vmem>>, vector<128x256xf32>
    %cst = arith.constant dense<0.000000e+00> : vector<16x256xf32>
    %2 = tpu.matmul %0, %1, %cst {dimension_numbers = #tpu.dot_dimension_numbers<[1], [0], [0], [1], [0, 0, 1, 1], [], []>} : vector<16x128xf32>, vector<128x256xf32>, vector<16x256xf32> -> vector<16x256xf32>
    %c0_3 = arith.constant 0 : index
    %c0_4 = arith.constant 0 : index
    %3 = vector.load %arg4[%c0_3, %c0_4] : memref<1x256xf32, #tpu.memory_space<vmem>>, vector<1x256xf32>
    %4 = vector.broadcast %3 : vector<1x256xf32> to vector<16x256xf32>
    %5 = arith.addf %2, %4 : vector<16x256xf32>
    %c0_5 = arith.constant 0 : index
    %c0_6 = arith.constant 0 : index
    %6 = vector.load %arg5[%c0_5, %c0_6] : memref<16x256xf32, #tpu.memory_space<vmem>>, vector<16x256xf32>
    tpu.vector_store %arg5[%c0_5, %c0_6], %5 {strides = array<i32>} : memref<16x256xf32, #tpu.memory_space<vmem>>, vector<16x256xf32>,
    return
  }
  func.func @transform_0(%arg0: i32, %arg1: i32) -> (i32, i32) {
    %c0_i32 = arith.constant 0 : i32
    %c0_i32_0 = arith.constant 0 : i32
    return %arg0, %c0_i32 : i32, i32
  }
  func.func @transform_1(%arg0: i32, %arg1: i32) -> (i32, i32) {
    %c0_i32 = arith.constant 0 : i32
    %c0_i32_0 = arith.constant 0 : i32
    return %c0_i32, %arg1 : i32, i32
  }
  func.func @transform_2(%arg0: i32, %arg1: i32) -> (i32, i32) {
    %c0_i32 = arith.constant 0 : i32
    %c0_i32_0 = arith.constant 0 : i32
    return %c0_i32, %arg1 : i32, i32
  }
  func.func @transform_3(%arg0: i32, %arg1: i32) -> (i32, i32) {
    %c0_i32 = arith.constant 0 : i32
    return %arg0, %arg1 : i32, i32
  }
}

</mosaic_0001>

<llo_original>
// kernel: tpu_custom_call.1
$region0: #{tpu_custom_call.1}
  #allocation0 [shape = 'u32[]', space=smem, size = 0x4, offset = 0x4, fixed_abs, tag = 'smem constant byte address 0x4 - core index']
  #allocation1 [shape = 'u32[72,128]{1,0:T(1,128)}', space=vmem, size = 0x9000, scoped, tag = 'internal scratch']
  %s0 = inlined_call_operand.hbm [shape: f32[16,128], index: 0, kind: input, shape index: {}]
  %s1 = inlined_call_operand.hbm [shape: f32[128,512], index: 1, kind: input, shape index: {}]
  %s2 = inlined_call_operand.hbm [shape: f32[1,512], index: 2, kind: input, shape index: {}]
  %s3 = inlined_call_operand.hbm [shape: f32[16,512], index: 3, kind: output, shape index: {}]
  %s4 = sld [smem:[#allocation0]]
  $region57: #{tpu_custom_call.1} parent=0
    _
  %s6 = ssub.s32 1, %s4
  %s7 = scalar_select 0, %s6, %s4
  $region1: #{tpu_custom_call.1} parent=0
    #allocation2 [shape = 'u8[8192]{0}', space=vmem, size = 0x2000, scoped, tag = 'input window, operand 0, single buffered']
    #allocation3 [shape = 's32[2]{0}', space=sflag, size = 0x8, scoped, tag = 'scoped memory for tpu_custom_call.1']
    #allocation4 [shape = 's32[2]{0}', space=sflag, size = 0x8, scoped, tag = 'scoped memory for tpu_custom_call.1']
    #allocation5 [shape = 'u8[262144]{0}', space=vmem, size = 0x40000, scoped, tag = 'input window, operand 1']
    #allocation6 [shape = 's32[2]{0}', space=sflag, size = 0x8, scoped, tag = 'scoped memory for tpu_custom_call.1']
    #allocation7 [shape = 'u8[2048]{0}', space=vmem, size = 0x800, scoped, tag = 'input window, operand 2']
    #allocation8 [shape = 'u8[32768]{0}', space=vmem, size = 0x8000, scoped, tag = 'output window, operand 0']
    %8 = vsyncpa [#allocation3], 0
    %9 = vsyncpa [#allocation6], 0
    %s10 = scalar_lea.sflag [#allocation6], 1
    %11 = vsyncpa %s10, 0
    %12 = vsyncpa [#allocation4], 0
    %s13 = scalar_lea.sflag [#allocation4], 1
    %14 = vsyncpa %s13, 0
    loop: start=0, step=1, limit=4
    $region2: #{tpu_custom_call.1} parent=1 // loop_pre_header
      _
    $region3: #{tpu_custom_call.1} parent=1 // loop_header
      %s16 = sphi 0, %s20
      %p17 = scmp.ge.s32.totalorder %s16, 4
      %s23 = sphi 0, %s35
      %s24 = sphi 0, %s31
      %s25 = sphi 0, %s23
      %s26 = sphi 0, %s24
      %s27 = sphi 0, %s25
      %s28 = sphi 0, %s26
      %s38 = sphi 0, %s40
      %s41 = sphi 0, %s38
      %s42 = sphi 0, %s41
      %s58 = sphi 0, %s42
      %s64 = sphi 0, %s66
      %s67 = sphi 0, %s64
      %s68 = sphi 0, %s67
      %s84 = sphi 0, %s68
      %s90 = sphi 0, %s92
      %s93 = sphi 0, %s90
      %s94 = sphi 0, %s93
      %s110 = sphi 0, %s94
      %s118 = sphi 0, %s120
      %s121 = sphi 0, %s118
      %s122 = sphi 0, %s121
      %s138 = sphi 0, %s122
    $region4: #{tpu_custom_call.1} parent=1 // loop_header_branch
      %19 = sbr.rel (%p17) target = $region8
    $region5: #{tpu_custom_call.1} parent=1 // loop_body
      %s21 = ssub.s32 %s16, 1
      %s22 = ssub.s32 %s16, 2
      %s29 = sadd.s32 1, %s24
      %p30 = scmp.ge.s32.totalorder %s29, 2
      %s31 = scalar_select %p30, 0, %s29
      %s32 = sadd.s32 1, %s23
      %s33 = scalar_select %p30, %s32, %s23
      %p34 = scmp.ge.s32.totalorder %s33, 1
      %s35 = scalar_select %p34, 0, %s33
      %s36 = ssub.s32 %s23, %s35
      %p37 = scmp.eq.s32.totalorder %s36, 0
      %s39 = sadd.s32 %s38, 1
      %s40 = scalar_select %p37, %s38, %s39
      %p43 = pneg %p37
      %p44 = scmp.eq.s32.totalorder %s16, 1
      %p45 = por %p43, %p44
      %p46 = scmp.ne.s32.totalorder %s38, %s41
      %p47 = scmp.eq.s32.totalorder %s16, 0
      %p48 = por %p46, %p47
      %p49 = scmp.ne.s32.totalorder %s38, %s41
      %p50 = scmp.eq.s32.totalorder %s21, 1
      %p51 = por %p49, %p50
      %p52 = scmp.ne.s32.totalorder %s41, %s42
      %p53 = scmp.eq.s32.totalorder %s21, 0
      %p54 = por %p52, %p53
      %p55 = scmp.ne.s32.totalorder %s41, %s42
      %p56 = scmp.eq.s32.totalorder %s22, 1
      %p57 = por %p55, %p56
      %p59 = scmp.ne.s32.totalorder %s42, %s58
      %p60 = scmp.eq.s32.totalorder %s22, 0
      %p61 = por %p59, %p60
      %s62 = ssub.s32 %s24, %s31
      %p63 = scmp.eq.s32.totalorder %s62, 0
      %s65 = sadd.s32 %s64, 1
      %s66 = scalar_select %p63, %s64, %s65
      %p69 = pneg %p63
      %p70 = scmp.eq.s32.totalorder %s16, 1
      %p71 = por %p69, %p70
      %p72 = scmp.ne.s32.totalorder %s64, %s67
      %p73 = scmp.eq.s32.totalorder %s16, 0
      %p74 = por %p72, %p73
      %p75 = scmp.ne.s32.totalorder %s64, %s67
      %p76 = scmp.eq.s32.totalorder %s21, 1
      %p77 = por %p75, %p76
      %p78 = scmp.ne.s32.totalorder %s67, %s68
      %p79 = scmp.eq.s32.totalorder %s21, 0
      %p80 = por %p78, %p79
      %p81 = scmp.ne.s32.totalorder %s67, %s68
      %p82 = scmp.eq.s32.totalorder %s22, 1
      %p83 = por %p81, %p82
      %p85 = scmp.ne.s32.totalorder %s68, %s84
      %p86 = scmp.eq.s32.totalorder %s22, 0
      %p87 = por %p85, %p86
      %s88 = ssub.s32 %s24, %s31
      %p89 = scmp.eq.s32.totalorder %s88, 0
      %s91 = sadd.s32 %s90, 1
      %s92 = scalar_select %p89, %s90, %s91
      %p95 = pneg %p89
      %p96 = scmp.eq.s32.totalorder %s16, 1
      %p97 = por %p95, %p96
      %p98 = scmp.ne.s32.totalorder %s90, %s93
      %p99 = scmp.eq.s32.totalorder %s16, 0
      %p100 = por %p98, %p99
      %p101 = scmp.ne.s32.totalorder %s90, %s93
      %p102 = scmp.eq.s32.totalorder %s21, 1
      %p103 = por %p101, %p102
      %p104 = scmp.ne.s32.totalorder %s93, %s94
      %p105 = scmp.eq.s32.totalorder %s21, 0
      %p106 = por %p104, %p105
      %p107 = scmp.ne.s32.totalorder %s93, %s94
      %p108 = scmp.eq.s32.totalorder %s22, 1
      %p109 = por %p107, %p108
      %p111 = scmp.ne.s32.totalorder %s94, %s110
      %p112 = scmp.eq.s32.totalorder %s22, 0
      %p113 = por %p111, %p112
      %s114 = ssub.s32 %s23, %s35
      %s115 = ssub.s32 %s24, %s31
      %s116 = sor.u32 %s114, %s115
      %p117 = scmp.eq.s32.totalorder %s116, 0
      %s119 = sadd.s32 %s118, 1
      %s120 = scalar_select %p117, %s118, %s119
      %p123 = pneg %p117
      %p124 = scmp.eq.s32.totalorder %s16, 1
      %p125 = por %p123, %p124
      %p126 = scmp.ne.s32.totalorder %s118, %s121
      %p127 = scmp.eq.s32.totalorder %s16, 0
      %p128 = por %p126, %p127
      %p129 = scmp.ne.s32.totalorder %s118, %s121
      %p130 = scmp.eq.s32.totalorder %s21, 1
      %p131 = por %p129, %p130
      %p132 = scmp.ne.s32.totalorder %s121, %s122
      %p133 = scmp.eq.s32.totalorder %s21, 0
      %p134 = por %p132, %p133
      %p135 = scmp.ne.s32.totalorder %s121, %s122
      %p136 = scmp.eq.s32.totalorder %s22, 1
      %p137 = por %p135, %p136
      %p139 = scmp.ne.s32.totalorder %s122, %s138
      %p140 = scmp.eq.s32.totalorder %s22, 0
      %p141 = por %p139, %p140
      %p142 = scmp.le.s32.totalorder 1, %s16
      %p143 = scmp.lt.s32.totalorder %s16, 3
      %p144 = pnand %p142, %p143
      %p145 = pneg %p144
      // Predicated region
      $region9: #{tpu_custom_call.1} parent=5 // pred_check
        _
      $region10: #{tpu_custom_call.1} parent=5 // pred_check_branch
        %147 = sbr.rel (%p144) target = $region12
      $region11: #{tpu_custom_call.1} parent=5 // pred_region
        %s148 = ssub.s32 %s16, 1
        // Predicated region
        $region13: #{tpu_custom_call.1} parent=11 // pred_check
          %p149 = pneg %p54
        $region14: #{tpu_custom_call.1} parent=11 // pred_check_branch
          %151 = sbr.rel (%p149) target = $region16
        $region15: #{tpu_custom_call.1} parent=11 // pred_region
          %s152 = smul.u32 2, %s25
          %154 = vsyncadd [#allocation3], 0
          %s155 = smul.addr %s152, 8
          %s156 = scalar_lea.hbm %s0, %s155
          %s157 = sshll.u32 %s156, 4
          %s158 = int_to_ptr.hbm [resolvable:$true] %s157
          %s159 = sshll.u32 [#allocation2], 4
          %s160 = int_to_ptr.vmem [resolvable:$true] %s159
          %165 = dma.hbm_to_vmem [thread:$0]  %s158, 256, %s160, [#allocation3], 128, 128, 8
        $region16: #{tpu_custom_call.1} parent=11 // pred_fallthru
          _
      $region12: #{tpu_custom_call.1} parent=5 // pred_fallthru
        _
      %p166 = scmp.lt.s32.totalorder %s16, 2
      // Predicated region
      $region17: #{tpu_custom_call.1} parent=5 // pred_check
        %p167 = pneg %p166
      $region18: #{tpu_custom_call.1} parent=5 // pred_check_branch
        %169 = sbr.rel (%p167) target = $region20
      $region19: #{tpu_custom_call.1} parent=5 // pred_region
        // Predicated region
        $region21: #{tpu_custom_call.1} parent=19 // pred_check
          %p170 = pneg %p74
        $region22: #{tpu_custom_call.1} parent=19 // pred_check_branch
          %172 = sbr.rel (%p170) target = $region24
        $region23: #{tpu_custom_call.1} parent=19 // pred_region
          %s173 = sand.u32 %s16, 1
          %s174 = scalar_lea.sflag [#allocation6], %s173
          %s175 = sand.u32 %s64, 1
          %s176 = smul.addr %s175, 256
          %s177 = scalar_lea.vmem [#allocation5], %s176
          %s178 = smul.u32 2, %s24
          %180 = vsyncadd %s174, 0
          %s181 = smul.addr %s178, 8
          %s182 = scalar_lea.hbm %s1, %s181
          %s183 = sshll.u32 %s182, 4
          %s184 = int_to_ptr.hbm [resolvable:$true] %s183
          %s185 = sshll.u32 %s177, 4
          %s186 = int_to_ptr.vmem [resolvable:$true] %s185
          %191 = dma.hbm_to_vmem [thread:$0]  %s184, 4096, %s186, %s174, 512, 256, 16
        $region24: #{tpu_custom_call.1} parent=19 // pred_fallthru
          _
        // Predicated region
        $region25: #{tpu_custom_call.1} parent=19 // pred_check
          %p192 = pneg %p100
        $region26: #{tpu_custom_call.1} parent=19 // pred_check_branch
          %194 = sbr.rel (%p192) target = $region28
        $region27: #{tpu_custom_call.1} parent=19 // pred_region
          %s195 = sand.u32 %s16, 1
          %s196 = scalar_lea.sflag [#allocation6], %s195
          %s197 = sand.u32 %s90, 1
          %s198 = smul.addr %s197, 2
          %s199 = scalar_lea.vmem [#allocation7], %s198
          %s200 = smul.u32 2, %s24
          %202 = vsyncadd %s196, 0
          %s203 = scalar_lea.hbm %s2, %s200
          %s205 = sshll.u32 %s203, 4
          %s206 = int_to_ptr.hbm [resolvable:$true] %s205
          %s207 = sshll.u32 %s199, 4
          %s208 = int_to_ptr.vmem [resolvable:$true] %s207
          %210 = dma.hbm_to_vmem [thread:$0]  %s206, 32, %s208, %s196
        $region28: #{tpu_custom_call.1} parent=19 // pred_fallthru
          _
      $region20: #{tpu_custom_call.1} parent=5 // pred_fallthru
        _
      %p211 = scmp.le.s32.totalorder 1, %s16
      %p212 = scmp.lt.s32.totalorder %s16, 3
      %p213 = pnand %p211, %p212
      %p214 = pneg %p213
      // Predicated region
      $region29: #{tpu_custom_call.1} parent=5 // pred_check
        _
      $region30: #{tpu_custom_call.1} parent=5 // pred_check_branch
        %216 = sbr.rel (%p213) target = $region32
      $region31: #{tpu_custom_call.1} parent=5 // pred_region
        %s217 = ssub.s32 %s16, 1
        // Predicated region
        $region33: #{tpu_custom_call.1} parent=31 // pred_check
          %p218 = pneg %p54
        $region34: #{tpu_custom_call.1} parent=31 // pred_check_branch
          %220 = sbr.rel (%p218) target = $region36
        $region35: #{tpu_custom_call.1} parent=31 // pred_region
          %222 = dma.done [#allocation3], 256
        $region36: #{tpu_custom_call.1} parent=31 // pred_fallthru
          _
        %s223 = sand.u32 %s21, 1
        %s224 = scalar_lea.sflag [#allocation6], %s223
        %s225 = sand.u32 %s67, 1
        %s226 = smul.addr %s225, 256
        %s227 = scalar_lea.vmem [#allocation5], %s226
        // Predicated region
        $region37: #{tpu_custom_call.1} parent=31 // pred_check
          %p228 = pneg %p80
        $region38: #{tpu_custom_call.1} parent=31 // pred_check_branch
          %230 = sbr.rel (%p228) target = $region40
        $region39: #{tpu_custom_call.1} parent=31 // pred_region
          %232 = dma.done %s224, 4096
        $region40: #{tpu_custom_call.1} parent=31 // pred_fallthru
          _
        %s233 = sand.u32 %s21, 1
        %s234 = scalar_lea.sflag [#allocation6], %s233
        %s235 = sand.u32 %s93, 1
        %s236 = smul.addr %s235, 2
        %s237 = scalar_lea.vmem [#allocation7], %s236
        // Predicated region
        $region41: #{tpu_custom_call.1} parent=31 // pred_check
          %p238 = pneg %p106
        $region42: #{tpu_custom_call.1} parent=31 // pred_check_branch
          %240 = sbr.rel (%p238) target = $region44
        $region43: #{tpu_custom_call.1} parent=31 // pred_region
          %242 = dma.done %s234, 32
        $region44: #{tpu_custom_call.1} parent=31 // pred_fallthru
          _
        %p243 = pneg %p54
        %p244 = pneg %p51
        %s245 = sand.u32 %s21, 1
        %s246 = scalar_lea.sflag [#allocation6], %s245
        %s247 = sand.u32 %s67, 1
        %s248 = smul.addr %s247, 256
        %s249 = scalar_lea.vmem [#allocation5], %s248
        %p250 = pneg %p80
        %p251 = pneg %p77
        %s252 = sand.u32 %s21, 1
        %s253 = scalar_lea.sflag [#allocation6], %s252
        %s254 = sand.u32 %s93, 1
        %s255 = smul.addr %s254, 2
        %s256 = scalar_lea.vmem [#allocation7], %s255
        %p257 = pneg %p106
        %p258 = pneg %p103
        %p259 = pneg %p134
        %p260 = pneg %p131
        %s261 = sand.u32 %s121, 1
        %s262 = scalar_lea.sflag [#allocation4], %s261
        %s263 = sand.u32 %s121, 1
        %s264 = smul.addr %s263, 32
        %s265 = scalar_lea.vmem [#allocation8], %s264
        %s266 = smul.u32 2, %s25
        %s267 = smul.u32 2, %s26
        %s268 = smul.u32 2, %s26
        %s269 = smul.u32 2, %s25
        %s270 = smul.u32 2, %s26
        %v271 = vld [vmem:[#allocation2] sm:$0xff]
        %v272 = vld [vmem:[#allocation2 + $0x8] sm:$0xff]
        %v273 = vld [vmem:[%s227] sm:$0xff]
        %v274 = vld [vmem:[%s227 + $0x8] sm:$0xff]
        %v275 = vld [vmem:[%s227 + $0x10] sm:$0xff]
        %v276 = vld [vmem:[%s227 + $0x18] sm:$0xff]
        %v277 = vld [vmem:[%s227 + $0x20] sm:$0xff]
        %v278 = vld [vmem:[%s227 + $0x28] sm:$0xff]
        %v279 = vld [vmem:[%s227 + $0x30] sm:$0xff]
        %v280 = vld [vmem:[%s227 + $0x38] sm:$0xff]
        %v281 = vld [vmem:[%s227 + $0x40] sm:$0xff]
        %v282 = vld [vmem:[%s227 + $0x48] sm:$0xff]
        %v283 = vld [vmem:[%s227 + $0x50] sm:$0xff]
        %v284 = vld [vmem:[%s227 + $0x58] sm:$0xff]
        %v285 = vld [vmem:[%s227 + $0x60] sm:$0xff]
        %v286 = vld [vmem:[%s227 + $0x68] sm:$0xff]
        %v287 = vld [vmem:[%s227 + $0x70] sm:$0xff]
        %v288 = vld [vmem:[%s227 + $0x78] sm:$0xff]
        %v289 = vld [vmem:[%s227 + $0x80] sm:$0xff]
        %v290 = vld [vmem:[%s227 + $0x88] sm:$0xff]
        %v291 = vld [vmem:[%s227 + $0x90] sm:$0xff]
        %v292 = vld [vmem:[%s227 + $0x98] sm:$0xff]
        %v293 = vld [vmem:[%s227 + $0xa0] sm:$0xff]
        %v294 = vld [vmem:[%s227 + $0xa8] sm:$0xff]
        %v295 = vld [vmem:[%s227 + $0xb0] sm:$0xff]
        %v296 = vld [vmem:[%s227 + $0xb8] sm:$0xff]
        %v297 = vld [vmem:[%s227 + $0xc0] sm:$0xff]
        %v298 = vld [vmem:[%s227 + $0xc8] sm:$0xff]
        %v299 = vld [vmem:[%s227 + $0xd0] sm:$0xff]
        %v300 = vld [vmem:[%s227 + $0xd8] sm:$0xff]
        %v301 = vld [vmem:[%s227 + $0xe0] sm:$0xff]
        %v302 = vld [vmem:[%s227 + $0xe8] sm:$0xff]
        %v303 = vld [vmem:[%s227 + $0xf0] sm:$0xff]
        %v304 = vld [vmem:[%s227 + $0xf8] sm:$0xff]
        %v305 = vld [vmem:[%s237] sm:$0x3]
        %v307 = vperm.slane %v305, 0
        %v308 = vperm.slane %v305, 1
        %311 = vmatpush.msra.mxu0 %v303
        %312 = vmatpush.msra.mxu0 %v301
        %313 = vmatpush.msra.mxu0 %v299
        %314 = vmatpush.msra.mxu0 %v297
        %315 = vmatpush.msra.mxu0 %v295
        %316 = vmatpush.msra.mxu0 %v293
        %317 = vmatpush.msra.mxu0 %v291
        %318 = vmatpush.msra.mxu0 %v289
        %319 = vmatpush.msra.mxu0 %v287
        %320 = vmatpush.msra.mxu0 %v285
        %321 = vmatpush.msra.mxu0 %v283
        %322 = vmatpush.msra.mxu0 %v281
        %323 = vmatpush.msra.mxu0 %v279
        %324 = vmatpush.msra.mxu0 %v277
        %325 = vmatpush.msra.mxu0 %v275
        %326 = vmatpush.msra.mxu0 %v273
        %327 = vmatmul.f32.gmra.mxu0 %v271
        %v328 = vpop.f32.mrf.mxu0
        %v329 = vadd.f32 %v307, %v328
        %330 = vmatmul.f32.gmra.mxu0 %v272
        %v331 = vpop.f32.mrf.mxu0
        %v332 = vadd.f32 %v307, %v331
        %333 = vdwg.mxu0
        %334 = vmatpush.msra.mxu0 %v304
        %335 = vmatpush.msra.mxu0 %v302
        %336 = vmatpush.msra.mxu0 %v300
        %337 = vmatpush.msra.mxu0 %v298
        %338 = vmatpush.msra.mxu0 %v296
        %339 = vmatpush.msra.mxu0 %v294
        %340 = vmatpush.msra.mxu0 %v292
        %341 = vmatpush.msra.mxu0 %v290
        %342 = vmatpush.msra.mxu0 %v288
        %343 = vmatpush.msra.mxu0 %v286
        %344 = vmatpush.msra.mxu0 %v284
        %345 = vmatpush.msra.mxu0 %v282
        %346 = vmatpush.msra.mxu0 %v280
        %347 = vmatpush.msra.mxu0 %v278
        %348 = vmatpush.msra.mxu0 %v276
        %349 = vmatpush.msra.mxu0 %v274
        %350 = vmatmul.f32.gmra.mxu0 %v271
        %v351 = vpop.f32.mrf.mxu0
        %v352 = vadd.f32 %v308, %v351
        %353 = vmatmul.f32.gmra.mxu0 %v272
        %v354 = vpop.f32.mrf.mxu0
        %v355 = vadd.f32 %v308, %v354
        %356 = vdwg.mxu0
        %357 = vst [vmem:[%s265] sm:$0xff] %v329
        %358 = vst [vmem:[%s265 + $0x8] sm:$0xff] %v352
        %359 = vst [vmem:[%s265 + $0x10] sm:$0xff] %v332
        %360 = vst [vmem:[%s265 + $0x18] sm:$0xff] %v355
        %s361 = sand.u32 %s121, 1
        %s362 = scalar_lea.sflag [#allocation4], %s361
        %s363 = sand.u32 %s121, 1
        %s364 = smul.addr %s363, 32
        %s365 = scalar_lea.vmem [#allocation8], %s364
        // Predicated region
        $region45: #{tpu_custom_call.1} parent=31 // pred_check
          %p366 = pneg %p131
        $region46: #{tpu_custom_call.1} parent=31 // pred_check_branch
          %368 = sbr.rel (%p366) target = $region48
        $region47: #{tpu_custom_call.1} parent=31 // pred_region
          %s369 = smul.u32 2, %s25
          %s370 = smul.u32 2, %s26
          %372 = vsyncadd %s362, 0
          %s373 = smul.addr %s369, 4
          %s374 = sadd.s32 %s370, %s373
          %s375 = smul.addr %s374, 8
          %s376 = scalar_lea.hbm %s3, %s375
          %s377 = sshll.u32 %s365, 4
          %s378 = int_to_ptr.vmem [resolvable:$true] %s377
          %s379 = sshll.u32 %s376, 4
          %s380 = int_to_ptr.hbm [resolvable:$true] %s379
          %385 = dma.vmem_to_hbm [thread:$0]  %s378, 512, %s380, %s362, 256, 512, 16
        $region48: #{tpu_custom_call.1} parent=31 // pred_fallthru
          _
      $region32: #{tpu_custom_call.1} parent=5 // pred_fallthru
        _
      %p386 = scmp.le.s32.totalorder 2, %s16
      // Predicated region
      $region49: #{tpu_custom_call.1} parent=5 // pred_check
        %p387 = pneg %p386
      $region50: #{tpu_custom_call.1} parent=5 // pred_check_branch
        %389 = sbr.rel (%p387) target = $region52
      $region51: #{tpu_custom_call.1} parent=5 // pred_region
        %s390 = ssub.s32 %s16, 2
        // Predicated region
        $region53: #{tpu_custom_call.1} parent=51 // pred_check
          %p391 = pneg %p137
        $region54: #{tpu_custom_call.1} parent=51 // pred_check_branch
          %393 = sbr.rel (%p391) target = $region56
        $region55: #{tpu_custom_call.1} parent=51 // pred_region
          %s394 = sand.u32 %s122, 1
          %s395 = scalar_lea.sflag [#allocation4], %s394
          %s396 = sand.u32 %s122, 1
          %s397 = smul.addr %s396, 32
          %s398 = scalar_lea.vmem [#allocation8], %s397
          %400 = dma.done %s395, 512
        $region56: #{tpu_custom_call.1} parent=51 // pred_fallthru
          _
      $region52: #{tpu_custom_call.1} parent=5 // pred_fallthru
        _
    $region6: #{tpu_custom_call.1} parent=1 // loop_footer
      %s20 = sadd.s32 1, %s16
    $region7: #{tpu_custom_call.1} parent=1 // loop_footer_branch
      %15 = sbr.rel target = $region3
    $region8: #{tpu_custom_call.1} parent=1 // loop_exit
      _
    %401 = vsyncpa [#allocation3], 1
    %s402 = scalar_lea.sflag [#allocation3], 1
    %403 = vsyncpa %s402, 1
    %404 = vsyncpa [#allocation6], 1
    %s405 = scalar_lea.sflag [#allocation6], 1
    %406 = vsyncpa %s405, 1
    %407 = vsyncpa [#allocation4], 1
    %s408 = scalar_lea.sflag [#allocation4], 1
    %409 = vsyncpa %s408, 1

</llo_original>
